<compile_context>
chip_gen: v6e
topology: v6e:2x2x1
jax: 0.10.0
libtpu: 0.0.40
codegen_flags: <defaults>
</compile_context>

<pallas_src>
import functools

import numpy as np
import jax
import jax.numpy as jnp
from jax.experimental import pallas as pl
from jax.experimental.pallas import tpu as pltpu


# ----------------------------------------------------------------------------
# Kernels
# ----------------------------------------------------------------------------
def _qnet_kernel(x_ref, w_ref, b_ref, o_ref):
    """One MXU pass + f32 bias add; store only the real action columns."""
    x = x_ref[...].astype(w_ref.dtype)                      # in-kernel bf16 cast
    q = jnp.dot(x, w_ref[...], preferred_element_type=jnp.float32) + b_ref[...]
    o_ref[...] = q[:, : o_ref.shape[-1]].astype(o_ref.dtype)


def _greedy_kernel(action_dim, x_ref, w_ref, b_ref, o_ref):
    """Fused forward + argmax (greedy branch of select_action): (batch,1) int32."""
    x = x_ref[...].astype(w_ref.dtype)
    q = jnp.dot(x, w_ref[...], preferred_element_type=jnp.float32) + b_ref[...]
    lane = jax.lax.broadcasted_iota(jnp.int32, q.shape, dimension=1)
    q = jnp.where(lane < action_dim, q, -jnp.inf)            # mask padded lanes
    best = jnp.max(q, axis=-1, keepdims=True)
    cand = jnp.where(q >= best, lane, jnp.int32(2 ** 30))     # first max index
    o_ref[...] = jnp.min(cand, axis=-1, keepdims=True).astype(jnp.int32)


# ----------------------------------------------------------------------------
# Host-side helpers (run ONCE per parameter update, never per forward call)
# ----------------------------------------------------------------------------
def _round_up(x, m):
    return ((x + m - 1) // m) * m


def fold_affine(params):
    """Fold a chain of affine layers into a single (W_eff, b_eff) in f32.

    Valid ONLY because the PyTorch q_network is a pure chain of nn.Linear with
    no activations in between; adding a ReLU/LayerNorm invalidates the fold.
    params: list of (W, b) with W shaped (in, out), b shaped (1, out).
    """
    w0, b0 = params[0]
    assert w0.ndim == 2 and b0.shape == (1, w0.shape[1]), "bad layer-0 shapes"
    w_eff = w0.astype(jnp.float32)
    b_eff = b0.astype(jnp.float32)
    for w, b in params[1:]:
        assert w.ndim == 2 and w.shape[0] == w_eff.shape[1], "layer chain mismatch"
        assert b.shape == (1, w.shape[1]), "bad bias shape"
        w = w.astype(jnp.float32)
        b = b.astype(jnp.float32)
        b_eff = b_eff @ w + b
        w_eff = w_eff @ w
    return w_eff, b_eff


def prepare_qnet(params, *, use_bf16=True):
    """Fold + lane-pad + cast, hoisted out of the forward hot path.

    Call once per parameter update; reuse (wk, bk, action_dim) for every
    forward / select_action call.
    """
    w_eff, b_eff = fold_affine(params)
    action_dim = w_eff.shape[1]
    a_pad = _round_up(max(action_dim, 128), 128)              # lane-dense MXU N
    if a_pad != action_dim:
        w_eff = jnp.pad(w_eff, ((0, 0), (0, a_pad - action_dim)))
        b_eff = jnp.pad(b_eff, ((0, 0), (0, a_pad - action_dim)))
    wk = w_eff.astype(jnp.bfloat16 if use_bf16 else jnp.float32)
    bk = b_eff                                                # f32 bias (post-MXU add)
    return wk, bk, action_dim


def _vmem_limit_bytes():
    """Scoped-VMEM limit per TPU generation (v7x: 64 MiB phys, v5e/v6e: 128 MiB)."""
    default_cap = 64 * 1024 * 1024
    try:
        cap = int(getattr(pltpu.get_tpu_info(), "vmem_capacity_bytes", default_cap))
    except Exception:
        cap = default_cap
    return int(min(cap - 16 * 1024 * 1024, 96 * 1024 * 1024))


def _tile_rows(batch, batch_tile):
    """Batch-tile size: single step for tiny batches, >=2 steps otherwise
    (lets v7x shard the parallel batch axis over both TensorCores)."""
    if batch <= 512:
        return batch                       # block dim == full array dim: always legal
    half = _round_up((batch + 1) // 2, 8)
    return max(256, min(_round_up(batch_tile, 8), half))


def _qnet_call(kernel, x, wk, bk, out_dtype, out_cols, *, batch_tile):
    batch, f0 = x.shape
    a_pad = wk.shape[1]
    assert wk.shape[0] == f0, "input feature mismatch"
    tb = _tile_rows(batch, batch_tile)
    grid = (pl.cdiv(batch, tb),)

    cost = pl.CostEstimate(
        flops=2 * batch * f0 * a_pad,
        transcendentals=0,
        bytes_accessed=int(
            batch * (f0 * x.dtype.itemsize + out_cols * np.dtype(out_dtype).itemsize)
            + wk.size * wk.dtype.itemsize + bk.size * bk.dtype.itemsize),
    )

    return pl.pallas_call(
        kernel,
        out_shape=jax.ShapeDtypeStruct((batch, out_cols), out_dtype),
        grid=grid,
        in_specs=[
            pl.BlockSpec((tb, f0), lambda i: (i, 0)),      # x tile advances over batch
            pl.BlockSpec((f0, a_pad), lambda i: (0, 0)),   # folded W: VMEM-resident
            pl.BlockSpec((1, a_pad), lambda i: (0, 0)),    # folded b: VMEM-resident
        ],
        out_specs=pl.BlockSpec((tb, out_cols), lambda i: (i, 0)),
        compiler_params=pltpu.CompilerParams(
            dimension_semantics=("parallel",),             # v7x: shard over both TCs
            vmem_limit_bytes=_vmem_limit_bytes(),
        ),
        cost_estimate=cost,
    )(x, wk, bk)


def qnet_forward(x, wk, bk, action_dim, *, batch_tile=2048):
    """Q-network forward: (batch, f0) f32 -> (batch, action_dim) f32."""
    return _qnet_call(_qnet_kernel, x, wk, bk, jnp.float32, action_dim,
                      batch_tile=batch_tile)


def select_action_greedy(x, wk, bk, action_dim, *, batch_tile=2048):
    """Greedy branch of select_action fused into the kernel: (batch, 1) int32."""
    kern = functools.partial(_greedy_kernel, action_dim)
    return _qnet_call(kern, x, wk, bk, jnp.int32, 1, batch_tile=batch_tile)


# ----------------------------------------------------------------------------
# References / init (PyTorch-equivalent)
# ----------------------------------------------------------------------------
def init_qnet_params(key, features, action_dim):
    """Linear(features[i], features[i+1]) ... Linear(features[-1], action_dim).
    PyTorch stores W as (out, in); we store the transpose (in, out), b as (1, out)."""
    dims = list(features) + [action_dim]
    params = []
    for i in range(len(dims) - 1):
        fan_in, fan_out = dims[i], dims[i + 1]
        key, kw, kb = jax.random.split(key, 3)
        bound = 1.0 / jnp.sqrt(jnp.float32(fan_in))
        w = jax.random.uniform(kw, (fan_in, fan_out), jnp.float32, -bound, bound)
        b = jax.random.uniform(kb, (1, fan_out), jnp.float32, -bound, bound)
        params.append((w, b))
    return params


def qnet_forward_ref(x, params):
    """Pure-JAX f32 chained reference (exact PyTorch forward semantics)."""
    h = x
    for w, b in params:
        h = h @ w + b
    return h


def qnet_forward_matched_ref(x, wk, bk, action_dim):
    """Reference mirroring the kernel numerics (bf16 MXU inputs, f32 accum)."""
    q = jnp.dot(x.astype(wk.dtype), wk, preferred_element_type=jnp.float32) + bk
    return q[:, :action_dim]


# ----------------------------------------------------------------------------
# Self-test
# ----------------------------------------------------------------------------
if __name__ == "__main__":
    features = [32, 64, 64]        # hidden widths of the Q-network
    action_dim = 8

    key = jax.random.PRNGKey(0)
    key, kx1, kx2, kx3 = jax.random.split(key, 4)
    params = init_qnet_params(key, features, action_dim)

    # One-time per parameter update (fold + pad + cast hoisted out of forward).
    wk, bk, adim = prepare_qnet(params, use_bf16=True)

    fwd = jax.jit(functools.partial(qnet_forward, action_dim=adim))
    act = jax.jit(functools.partial(select_action_greedy, action_dim=adim))

    # --- tiny batch (single grid step, whole batch resident) -----------------
    batch = 4
    x = jax.random.normal(kx1, (batch, features[0]), jnp.float32)
    q = jax.block_until_ready(fwd(x, wk, bk))
    assert q.shape == (batch, action_dim)
    q_m = qnet_forward_matched_ref(x, wk, bk, adim)
    assert jnp.allclose(q, q_m, atol=1e-4, rtol=1e-4), "mismatch vs matched ref"
    q_ref = qnet_forward_ref(x, params)
    assert jnp.allclose(q, q_ref, atol=2e-2, rtol=2e-2), "mismatch vs f32 ref"

    a = jax.block_until_ready(act(x, wk, bk))
    assert a.shape == (batch, 1)
    assert jnp.array_equal(a[:, 0].astype(jnp.int32),
                           jnp.argmax(q, axis=-1).astype(jnp.int32)), "greedy mismatch"

    # --- mid batch, not a multiple of 8 (full-dim block, single step) --------
    batch2 = 300
    x2 = jax.random.normal(kx2, (batch2, features[0]), jnp.float32)
    q2 = jax.block_until_ready(fwd(x2, wk, bk))
    assert q2.shape == (batch2, action_dim)
    assert jnp.allclose(q2, qnet_forward_matched_ref(x2, wk, bk, adim),
                        atol=1e-4, rtol=1e-4), "mismatch vs matched ref (mid)"
    assert jnp.allclose(q2, qnet_forward_ref(x2, params),
                        atol=2e-2, rtol=2e-2), "mismatch vs f32 ref (mid)"

    # --- larger batch: multi-step parallel grid + partial boundary block -----
    batch3 = 1500
    x3 = jax.random.normal(kx3, (batch3, features[0]), jnp.float32)
    q3 = jax.block_until_ready(fwd(x3, wk, bk))
    assert q3.shape == (batch3, action_dim)
    assert jnp.allclose(q3, qnet_forward_matched_ref(x3, wk, bk, adim),
                        atol=1e-4, rtol=1e-4), "mismatch vs matched ref (tiled)"
    assert jnp.allclose(q3, qnet_forward_ref(x3, params),
                        atol=2e-2, rtol=2e-2), "mismatch vs f32 ref (tiled)"
    a3 = jax.block_until_ready(act(x3, wk, bk))
    assert a3.shape == (batch3, 1)
    assert jnp.array_equal(a3[:, 0].astype(jnp.int32),
                           jnp.argmax(q3, axis=-1).astype(jnp.int32)), "greedy mismatch (tiled)"

    # TODO(synk): epsilon-greedy exploration RNG, prioritized replay buffer,
    # smooth-L1 loss + Adam update, and the train/diagnose/heal loops are
    # host-side training/control logic; only the Q-network forward (and its
    # fused greedy-argmax consumer) are Pallas kernels.

    print("KERNEL_OK")
</pallas_src>

<mosaic_0001>
module attributes {stable_mosaic.version = 11 : i64} {
  func.func @_qnet_kernel(%arg0: i32, %arg1: memref<4x32xf32, #tpu.memory_space<vmem>>, %arg2: memref<32x128xbf16, #tpu.memory_space<vmem>>, %arg3: memref<1x128xf32, #tpu.memory_space<vmem>>, %arg4: memref<4x8xf32, #tpu.memory_space<vmem>>) attributes {dimension_semantics = [#tpu.dimension_semantics<parallel>], iteration_bounds = array<i64: 1>, scalar_prefetch = 0 : i64, scratch_operands = 0 : i64, tpu.core_type = #tpu.core_type<tc>, window_params = [{transform_indices = @transform_0, window_bounds = array<i64: 4, 32>}, {pipeline_mode = #tpu.pipeline_mode<synchronous>, transform_indices = @transform_1, window_bounds = array<i64: 32, 128>}, {pipeline_mode = #tpu.pipeline_mode<synchronous>, transform_indices = @transform_2, window_bounds = array<i64: 1, 128>}, {transform_indices = @transform_3, window_bounds = array<i64: 4, 8>}]} {
    %c0 = arith.constant 0 : index
    %c0_0 = arith.constant 0 : index
    %0 = vector.load %arg1[%c0, %c0_0] : memref<4x32xf32, #tpu.memory_space<vmem>>, vector<4x32xf32>
    %1 = arith.truncf %0 : vector<4x32xf32> to vector<4x32xbf16>
    %c0_1 = arith.constant 0 : index
    %c0_2 = arith.constant 0 : index
    %2 = vector.load %arg2[%c0_1, %c0_2] : memref<32x128xbf16, #tpu.memory_space<vmem>>, vector<32x128xbf16>
    %cst = arith.constant dense<0.000000e+00> : vector<4x128xf32>
    %3 = tpu.matmul %1, %2, %cst {dimension_numbers = #tpu.dot_dimension_numbers<[1], [0], [0], [1], [0, 0, 1, 1], [], []>} : vector<4x32xbf16>, vector<32x128xbf16>, vector<4x128xf32> -> vector<4x128xf32>
    %c0_3 = arith.constant 0 : index
    %c0_4 = arith.constant 0 : index
    %4 = vector.load %arg3[%c0_3, %c0_4] : memref<1x128xf32, #tpu.memory_space<vmem>>, vector<1x128xf32>
    %5 = vector.broadcast %4 : vector<1x128xf32> to vector<4x128xf32>
    %6 = arith.addf %3, %5 : vector<4x128xf32>
    %7 = vector.extract_strided_slice %6 {offsets = [0, 0], sizes = [4, 8], strides = [1, 1]} : vector<4x128xf32> to vector<4x8xf32>
    %c0_5 = arith.constant 0 : index
    %c0_6 = arith.constant 0 : index
    %8 = vector.load %arg4[%c0_5, %c0_6] : memref<4x8xf32, #tpu.memory_space<vmem>>, vector<4x8xf32>
    tpu.vector_store %arg4[%c0_5, %c0_6], %7 {strides = array<i32>} : memref<4x8xf32, #tpu.memory_space<vmem>>, vector<4x8xf32>,
    return
  }
  func.func @transform_0(%arg0: i32) -> (i32, i32) {
    %c0_i32 = arith.constant 0 : i32
    %c0_i32_0 = arith.constant 0 : i32
    return %arg0, %c0_i32 : i32, i32
  }
  func.func @transform_1(%arg0: i32) -> (i32, i32) {
    %c0_i32 = arith.constant 0 : i32
    %c0_i32_0 = arith.constant 0 : i32
    %c0_i32_1 = arith.constant 0 : i32
    return %c0_i32, %c0_i32_0 : i32, i32
  }
  func.func @transform_2(%arg0: i32) -> (i32, i32) {
    %c0_i32 = arith.constant 0 : i32
    %c0_i32_0 = arith.constant 0 : i32
    %c0_i32_1 = arith.constant 0 : i32
    return %c0_i32, %c0_i32_0 : i32, i32
  }
  func.func @transform_3(%arg0: i32) -> (i32, i32) {
    %c0_i32 = arith.constant 0 : i32
    %c0_i32_0 = arith.constant 0 : i32
    return %arg0, %c0_i32 : i32, i32
  }
}

</mosaic_0001>

<llo_original>
// kernel: qnet_forward.1
$region0: #{qnet_forward.1}
  #allocation0 [shape = 'u32[]', space=smem, size = 0x4, offset = 0x4, fixed_abs, tag = 'smem constant byte address 0x4 - core index']
  #allocation1 [shape = 'u32[144,128]{1,0:T(1,128)}', space=vmem, size = 0x12000, scoped, tag = 'internal scratch']
  %s0 = inlined_call_operand.hbm [shape: f32[4,32], index: 0, kind: input, shape index: {}]
  %s1 = inlined_call_operand.hbm [shape: bf16[32,128], index: 1, kind: input, shape index: {}]
  %s2 = inlined_call_operand.vmem [shape: f32[1,128], index: 2, kind: input, shape index: {}]
  %s3 = inlined_call_operand.hbm [shape: f32[4,8], index: 3, kind: output, shape index: {}]
  %s4 = sld [smem:[#allocation0]]
  $region30: #{qnet_forward.1} parent=0
    _
  %s6 = ssub.s32 1, %s4
  %s7 = scalar_select 0, %s6, %s4
  $region1: #{qnet_forward.1} parent=0
    #allocation2 [shape = 'u8[2048]{0}', space=vmem, size = 0x800, scoped, tag = 'input window, operand 0, single buffered']
    #allocation3 [shape = 's32[1]{0}', space=sflag, size = 0x4, scoped, tag = 'scoped memory for qnet_forward.1']
    #allocation4 [shape = 's32[1]{0}', space=sflag, size = 0x4, scoped, tag = 'scoped memory for qnet_forward.1']
    #allocation5 [shape = 'u8[8192]{0}', space=vmem, size = 0x2000, scoped, tag = 'input window, operand 1, single buffered']
    #allocation6 [shape = 's32[1]{0}', space=sflag, size = 0x4, scoped, tag = 'scoped memory for qnet_forward.1']
    #allocation7 [shape = 'u8[2048]{0}', space=vmem, size = 0x800, scoped, tag = 'output window, operand 0, single buffered']
    %8 = vsyncpa [#allocation3], 0
    %9 = vsyncpa [#allocation6], 0
    %10 = vsyncpa [#allocation4], 0
    // Predicated region
    $region2: #{qnet_forward.1} parent=1 // pred_check
      _
    $region3: #{qnet_forward.1} parent=1 // pred_check_branch
      %12 = sbr.rel (0) target = $region5
    $region4: #{qnet_forward.1} parent=1 // pred_region
      %s14 = ssub.s32 64, 64
      %15 = vsyncadd [#allocation3], %s14
      %s17 = sshll.u32 [#allocation2], 4
      %s18 = int_to_ptr.vmem [resolvable:$true] %s17
      %20 = dma.hbm_to_vmem [thread:$0]  %s0, 64, %s18, [#allocation3]
    $region5: #{qnet_forward.1} parent=1 // pred_fallthru
      _
    // Predicated region
    $region6: #{qnet_forward.1} parent=1 // pred_check
      _
    $region7: #{qnet_forward.1} parent=1 // pred_check_branch
      %22 = sbr.rel (0) target = $region9
    $region8: #{qnet_forward.1} parent=1 // pred_region
      %s24 = ssub.s32 256, 256
      %25 = vsyncadd [#allocation6], %s24
      %s26 = sshll.u32 [#allocation5], 4
      %s27 = int_to_ptr.vmem [resolvable:$true] %s26
      %32 = dma.hbm_to_vmem [thread:$0]  %s1, 256, %s27, [#allocation6], 64, 64, 4
    $region9: #{qnet_forward.1} parent=1 // pred_fallthru
      _
    // Predicated region
    $region10: #{qnet_forward.1} parent=1 // pred_check
      _
    $region11: #{qnet_forward.1} parent=1 // pred_check_branch
      %34 = sbr.rel (0) target = $region13
    $region12: #{qnet_forward.1} parent=1 // pred_region
      _
    $region13: #{qnet_forward.1} parent=1 // pred_fallthru
      _
    // Predicated region
    $region14: #{qnet_forward.1} parent=1 // pred_check
      _
    $region15: #{qnet_forward.1} parent=1 // pred_check_branch
      %36 = sbr.rel (0) target = $region17
    $region16: #{qnet_forward.1} parent=1 // pred_region
      %37 = dma.done [#allocation3], 64
    $region17: #{qnet_forward.1} parent=1 // pred_fallthru
      _
    // Predicated region
    $region18: #{qnet_forward.1} parent=1 // pred_check
      _
    $region19: #{qnet_forward.1} parent=1 // pred_check_branch
      %39 = sbr.rel (0) target = $region21
    $region20: #{qnet_forward.1} parent=1 // pred_region
      %40 = dma.done [#allocation6], 256
    $region21: #{qnet_forward.1} parent=1 // pred_fallthru
      _
    %v42 = vld [vmem:[#allocation2] sm:$0xf]
    %v43 = vpack.c.bf16 %v42, %v42
    %v44 = vld [vmem:[#allocation5] sm:$0xf]
    %v45 = vld [vmem:[#allocation5 + $0x4] sm:$0xf]
    %v46 = vld [vmem:[#allocation5 + $0x8] sm:$0xf]
    %v47 = vld [vmem:[#allocation5 + $0xc] sm:$0xf]
    %v48 = vld [vmem:[%s2] sm:$0x1]
    %v50 = vlaneseq
    %v51 = vshrl.u32 %v50, 7
    %v52 = vsub.s32 0, %v51
    %v53 = vrot.slane %v48, %v52
    %v59 = vunpack.c.l.b16 %v44
    %v60 = vunpack.c.l.b16 %v45
    %v61 = vunpack.c.l.b16 %v46
    %v62 = vunpack.c.l.b16 %v47
    %v63 = vpack.c.b16 %v60, %v59
    %v64 = vpack.c.b16 %v62, %v61
    %vm67 = vcmask 261120
    %v69 = vsel %vm67, %v43, 0
    %71 = vmatprep.subr.bf16.mxu0 0
    %72 = vmatpush1.bf16.msra.mxu0 0
    %73 = vmatprep.subr.bf16.mxu0 0
    %74 = vmatpush1.bf16.msra.mxu0 0
    %75 = vmatprep.subr.bf16.mxu0 0
    %76 = vmatpush1.bf16.msra.mxu0 0
    %77 = vmatprep.subr.bf16.mxu0 0
    %78 = vmatpush1.bf16.msra.mxu0 0
    %79 = vmatprep.subr.bf16.mxu0 0
    %80 = vmatpush1.bf16.msra.mxu0 0
    %81 = vmatprep.subr.bf16.mxu0 0
    %82 = vmatpush1.bf16.msra.mxu0 0
    %83 = vmatprep.subr.bf16.mxu0 0
    %84 = vmatpush1.bf16.msra.mxu0 %v64
    %85 = vmatprep.subr.bf16.mxu0 0
    %86 = vmatpush1.bf16.msra.mxu0 %v63
    %87 = vmatprep.subr.bf16.mxu0 0
    %88 = vmatpush2.bf16.msra.mxu0 0
    %89 = vmatprep.subr.bf16.mxu0 0
    %90 = vmatpush2.bf16.msra.mxu0 0
    %91 = vmatprep.subr.bf16.mxu0 0
    %92 = vmatpush2.bf16.msra.mxu0 0
    %93 = vmatprep.subr.bf16.mxu0 0
    %94 = vmatpush2.bf16.msra.mxu0 0
    %95 = vmatprep.subr.bf16.mxu0 0
    %96 = vmatpush2.bf16.msra.mxu0 0
    %97 = vmatprep.subr.bf16.mxu0 0
    %98 = vmatpush2.bf16.msra.mxu0 0
    %99 = vmatprep.subr.bf16.mxu0 0
    %100 = vmatpush2.bf16.msra.mxu0 0
    %101 = vmatprep.subr.bf16.mxu0 0
    %102 = vmatpush2.bf16.msra.mxu0 0
    %103 = vmatprep.mubr.bf16.mxu0 0
    %104 = vmatmul.mubr.bf16.gmra.mxu0 %v69
    %v105 = vpop.f32.mrf.mxu0
    %v106 = vadd.f32 %v53, %v105
    %v107 = vpop.f32.mrf.mxu0
    %v108 = vpop.f32.mrf.mxu0
    %v109 = vpop.f32.mrf.mxu0
    %110 = vdwg.mxu0
    %vm111 = vcmask 60416
    %112 = vst.msk [vmem:[#allocation7] sm:$0xf] %vm111, %v106
    // Predicated region
    $region22: #{qnet_forward.1} parent=1 // pred_check
      _
    $region23: #{qnet_forward.1} parent=1 // pred_check_branch
      %114 = sbr.rel (0) target = $region25
    $region24: #{qnet_forward.1} parent=1 // pred_region
      %s116 = ssub.s32 64, 64
      %117 = vsyncadd [#allocation4], %s116
      %s119 = sshll.u32 [#allocation7], 4
      %s120 = int_to_ptr.vmem [resolvable:$true] %s119
      %122 = dma.vmem_to_hbm [thread:$0]  %s120, 64, %s3, [#allocation4]
    $region25: #{qnet_forward.1} parent=1 // pred_fallthru
      _
    // Predicated region
    $region26: #{qnet_forward.1} parent=1 // pred_check
      _
    $region27: #{qnet_forward.1} parent=1 // pred_check_branch
      %124 = sbr.rel (0) target = $region29
    $region28: #{qnet_forward.1} parent=1 // pred_region
      %125 = dma.done [#allocation4], 64
    $region29: #{qnet_forward.1} parent=1 // pred_fallthru
      _
    %126 = vsyncpa [#allocation3], 1
    %127 = vsyncpa [#allocation6], 1
    %128 = vsyncpa [#allocation4], 1

</llo_original>
